<compile_context>
chip_gen: v7x
topology: tpu7x:2x2x1
jax: 0.10.0
libtpu: 0.0.40
codegen_flags: <defaults>
</compile_context>

<pallas_src>
import functools

import jax
import jax.numpy as jnp
from jax.experimental import pallas as pl
from jax.experimental.pallas import tpu as pltpu


def _lsce_kernel(logits_ref, label_ref, loss_ref, cnt_ref, *,
                 lb_pos, lb_neg, ignore_index, num_classes, spatial, tile):
    """One (batch-block b, spatial-tile s) grid point.

    logits_ref : (Bblk, C, TILE) native dtype - classes on sublanes, spatial on lanes
    label_ref  : (Bblk, 1, TILE) int32
    loss_ref   : (1, 1, 1, 128) f32 partial loss sum for this block
    cnt_ref    : (1, 1, 1, 128) f32 partial valid count for this block
    """
    x = logits_ref[...].astype(jnp.float32)            # (Bblk, C, TILE)
    # TODO(synk): for bf16 inputs on v6e/v7x a bf16-native max/exp path (no full
    # f32 cast) would cut VALU traffic; needs precision validation, keep f32 here.
    lab = label_ref[...]                                # (Bblk, 1, TILE) int32

    ignore = lab == ignore_index                        # (Bblk, 1, TILE) bool
    lab0 = jnp.where(ignore, 0, lab)                    # label[ignore] = 0 (PyTorch semantics)

    # Numerically-stable log-softmax pieces over the class (sublane) axis,
    # without materializing the full (Bblk, C, TILE) log-softmax tensor.
    m = jnp.max(x, axis=1, keepdims=True)                         # (Bblk, 1, TILE)
    z = jnp.sum(jnp.exp(x - m), axis=1, keepdims=True)            # (Bblk, 1, TILE)
    lse = m + jnp.log(z)                                          # logsumexp
    sum_x = jnp.sum(x, axis=1, keepdims=True)                     # (Bblk, 1, TILE)

    # One-hot gather: a tiny (1, C, 1) class iota broadcast against the labels
    # (no full-size (Bblk, C, TILE) int32 iota is materialized).
    cls = jax.lax.broadcasted_iota(jnp.int32, (1, num_classes, 1), 1)
    x_at = jnp.sum(jnp.where(cls == lab0, x, 0.0),
                   axis=1, keepdims=True)                         # x[label, pos]
    # NOTE: labels outside [0, C) that are not ignore_index silently contribute
    # x_at = 0 instead of erroring like PyTorch's NLL loss.

    # smoothed one-hot:  lb_neg everywhere + (lb_pos - lb_neg) at the label
    #   loss = -((lb_pos-lb_neg) * log_softmax[label] + lb_neg * sum_c log_softmax[c])
    loss = -((lb_pos - lb_neg) * (x_at - lse)
             + lb_neg * (sum_x - num_classes * lse))              # (Bblk, 1, TILE)

    valid = jnp.logical_not(ignore)
    if spatial % tile:  # static: mask the ragged last spatial tile (garbage lanes)
        s = pl.program_id(1)
        pos = s * tile + jax.lax.broadcasted_iota(jnp.int32, lab.shape, 2)
        valid = jnp.logical_and(valid, pos < spatial)
    loss = jnp.where(valid, loss, 0.0)        # also squashes NaN/Inf in masked lanes

    ones = jnp.ones((1, 128), jnp.float32)
    loss_ref[0, 0] = jnp.sum(loss) * ones
    cnt_ref[0, 0] = jnp.sum(valid.astype(jnp.float32)) * ones


def _vmem_limit_bytes():
    """Chip-aware scoped-VMEM limit (48 MiB on v7x-class 64 MiB VMEM, ~100 MiB on v5e/v6e)."""
    cap = None
    try:
        cap = int(pltpu.get_tpu_info().vmem_capacity_bytes)
    except Exception:
        cap = None
    if not cap or cap <= 0:
        cap = 64 * 1024 * 1024          # conservative: smallest VMEM across v5e/v6e/v7x
    return max(32 << 20, min(cap - (16 << 20), 100 << 20))


def _largest_divisor_leq(n, cap):
    cap = max(1, min(n, cap))
    for d in range(cap, 0, -1):
        if n % d == 0:
            return d
    return 1


def _pick_blocks(n_batch, num_classes, spatial, itemsize, *,
                 vmem_limit_bytes, max_lanes=None):
    """Choose (Bblk, spatial TILE, grid) from the f32 VMEM working-set budget.

    Per spatial position ("lane") of a block the VMEM footprint is roughly
      2 * C * itemsize   (double-buffered native-dtype logits)
    + 6 * C * 4          (f32 temporaries: cast, exp, select, compare, ...)
    + 2 * 4              (double-buffered int32 labels)
    """
    per_lane = 2 * num_classes * itemsize + 6 * num_classes * 4 + 2 * 4
    budget = int(vmem_limit_bytes * 0.6)            # headroom for compiler scratch
    lanes_vmem = budget // per_lane
    # Bound unrolled code size: keep the f32 logits block at <= ~8 MiB of vregs.
    padded_c = ((num_classes + 7) // 8) * 8
    lanes_code = (8 << 20) // (4 * padded_c)
    lanes = max(128, min(lanes_vmem, lanes_code))
    if max_lanes is not None:                       # test hook
        lanes = max(128, min(lanes, max_lanes))

    if lanes < spatial:
        # Tile the spatial axis only (lane tile = multiple of 128).
        tile = max(128, (lanes // 128) * 128)
        bblk = 1
    else:
        # Whole spatial extent fits: block several batch images per grid step
        # (one fully contiguous HBM chunk).  Bblk divides N -> no batch mask.
        tile = spatial
        bblk = _largest_divisor_leq(n_batch, max(1, lanes // max(1, spatial)))
    n_bb = pl.cdiv(n_batch, bblk)
    n_st = pl.cdiv(spatial, tile)

    # Megacore: v7x has two TensorCores; make sure the "parallel" grid has at
    # least 2 points whenever the problem allows it.
    if n_bb * n_st == 1:
        if n_batch >= 2:
            bblk = _largest_divisor_leq(n_batch, n_batch // 2)
            n_bb = n_batch // bblk
        elif spatial >= 256:
            tile = ((pl.cdiv(spatial, 2) + 127) // 128) * 128
            n_st = pl.cdiv(spatial, tile)
    return bblk, tile, n_bb, n_st
    # TODO(synk): vocab-scale C needs a class-tiled online-logsumexp variant;
    # here C must fit one VMEM block.


def _to_ncs(logits, label):
    """Massage inputs to (N, C, S) / (N, 1, S) without HBM traffic when possible."""
    if logits.ndim == 2:
        # (B, C) classification: one transpose puts rows on the lane axis.
        # TODO(synk): for large B*C a class-on-lanes kernel variant would avoid
        # this extra HBM pass; for small C the classes-on-sublanes layout wins.
        logits3 = jnp.transpose(logits, (1, 0))[None]            # (1, C, B)
        label3 = label.reshape(1, 1, -1)
        return logits3, label3
    n, c = logits.shape[:2]
    logits3 = logits.reshape(n, c, -1)                           # free: contiguous dims
    label3 = label.reshape(n, 1, -1)
    return logits3, label3


def label_smooth_softmax_ce(logits, label, *, lb_smooth=0.1,
                            ignore_index=-100, reduction='mean',
                            _max_lanes=None):
    """Matches LabelSmoothSoftmaxCEV1.forward for reduction in {'mean', 'sum'}.

    logits: (N, C, *spatial) or (N, C), any float dtype (kept native into the kernel)
    label : (N, *spatial) or (N,) int
    """
    if reduction not in ('mean', 'sum'):
        # TODO(synk): reduction='none' needs a per-element loss output path.
        raise NotImplementedError("reduction='none' not implemented")

    num_classes = logits.shape[1]
    logits3, label3 = _to_ncs(logits, label)
    label3 = label3.astype(jnp.int32)
    n_batch, c, spatial = logits3.shape
    itemsize = jnp.dtype(logits3.dtype).itemsize

    vmem_limit = _vmem_limit_bytes()
    bblk, tile, n_bb, n_st = _pick_blocks(
        n_batch, c, spatial, itemsize,
        vmem_limit_bytes=vmem_limit, max_lanes=_max_lanes)

    lb_pos = 1.0 - lb_smooth
    lb_neg = lb_smooth / num_classes

    kernel = functools.partial(
        _lsce_kernel, lb_pos=lb_pos, lb_neg=lb_neg, ignore_index=ignore_index,
        num_classes=c, spatial=spatial, tile=tile)

    part_shape = jax.ShapeDtypeStruct((n_bb, n_st, 1, 128), jnp.float32)
    loss_parts, cnt_parts = pl.pallas_call(
        kernel,
        out_shape=(part_shape, part_shape),
        grid_spec=pltpu.PrefetchScalarGridSpec(
            num_scalar_prefetch=0,
            grid=(n_bb, n_st),
            in_specs=[
                pl.BlockSpec((bblk, c, tile), lambda b, s: (b, 0, s)),
                pl.BlockSpec((bblk, 1, tile), lambda b, s: (b, 0, s)),
            ],
            out_specs=(
                pl.BlockSpec((1, 1, 1, 128), lambda b, s: (b, s, 0, 0)),
                pl.BlockSpec((1, 1, 1, 128), lambda b, s: (b, s, 0, 0)),
            ),
        ),
        compiler_params=pltpu.CompilerParams(
            dimension_semantics=("parallel", "parallel"),
            vmem_limit_bytes=int(vmem_limit)),
    )(logits3, label3)

    total = jnp.sum(loss_parts[:, :, 0, 0])
    n_valid = jnp.sum(cnt_parts[:, :, 0, 0])
    if reduction == 'mean':
        # NOTE: like PyTorch, an all-ignored batch yields 0/0 = NaN.
        return total / n_valid
    return total


def _reference(logits, label, *, lb_smooth=0.1, ignore_index=-100, reduction='mean'):
    """Pure-JAX reference mirroring the PyTorch module."""
    logits = logits.astype(jnp.float32)
    c = logits.shape[1]
    perm = (0,) + tuple(range(2, logits.ndim)) + (1,)
    x = jnp.transpose(logits, perm).reshape(-1, c)
    lab = label.reshape(-1)
    ignore = lab == ignore_index
    n_valid = jnp.sum(~ignore)
    lab0 = jnp.where(ignore, 0, lab)
    lb_pos, lb_neg = 1.0 - lb_smooth, lb_smooth / c
    one_hot = jnp.full_like(x, lb_neg).at[jnp.arange(x.shape[0]), lab0].set(lb_pos)
    logs = jax.nn.log_softmax(x, axis=-1)
    loss = -jnp.sum(logs * one_hot, axis=-1)
    loss = jnp.where(ignore, 0.0, loss)
    if reduction == 'mean':
        return jnp.sum(loss) / n_valid
    return jnp.sum(loss)


if __name__ == "__main__":
    key = jax.random.PRNGKey(0)
    keys = jax.random.split(key, 12)

    def run_case(k0, k1, k2, logits_shape, label_shape, num_classes,
                 reduction='mean', **kw):
        logits = jax.random.normal(k0, logits_shape, dtype=jnp.float32)
        label = jax.random.randint(k1, label_shape, 0, num_classes, dtype=jnp.int32)
        ignore_mask = jax.random.uniform(k2, label_shape) < 0.1
        label = jnp.where(ignore_mask, -100, label)
        out = label_smooth_softmax_ce(logits, label, reduction=reduction, **kw)
        out = jax.block_until_ready(out)
        ref = _reference(logits, label, reduction=reduction)
        assert jnp.allclose(out, ref, rtol=1e-5, atol=1e-5), (logits_shape, reduction, out, ref)

    # 1) Main 4-D segmentation-style case (N, C, H, W), reduction='mean'.
    run_case(keys[0], keys[1], keys[2], (2, 4, 16, 16), (2, 16, 16), 4, 'mean')
    # 2) Same shapes, reduction='sum'.
    run_case(keys[0], keys[1], keys[2], (2, 4, 16, 16), (2, 16, 16), 4, 'sum')
    # 3) Odd shapes: full-spatial blocks with C / spatial not multiples of 8 / 128.
    run_case(keys[3], keys[4], keys[5], (3, 5, 9, 7), (3, 9, 7), 5, 'mean')
    # 4) 2-D classification path (B, C).
    run_case(keys[6], keys[7], keys[8], (8, 6), (8,), 6, 'mean')
    # 5) Force the spatial-tiled + ragged-tail masking path with a small lane cap.
    run_case(keys[9], keys[10], keys[11], (2, 4, 200), (2, 200), 4, 'mean',
             _max_lanes=128)

    print("KERNEL_OK")
</pallas_src>

<mosaic_0001>
module attributes {stable_mosaic.version = 11 : i64} {
  func.func @_lsce_kernel(%arg0: i32, %arg1: i32, %arg2: memref<1x4x256xf32, #tpu.memory_space<vmem>>, %arg3: memref<1x1x256xi32, #tpu.memory_space<vmem>>, %arg4: memref<1x1x1x128xf32, #tpu.memory_space<vmem>>, %arg5: memref<1x1x1x128xf32, #tpu.memory_space<vmem>>) attributes {dimension_semantics = [#tpu.dimension_semantics<parallel>, #tpu.dimension_semantics<parallel>], iteration_bounds = array<i64: 2, 1>, scalar_prefetch = 0 : i64, scratch_operands = 0 : i64, tpu.core_type = #tpu.core_type<tc>, window_params = [{transform_indices = @transform_0, window_bounds = array<i64: 1, 4, 256>}, {transform_indices = @transform_1, window_bounds = array<i64: 1, 1, 256>}, {transform_indices = @transform_2, window_bounds = array<i64: 1, 1, 1, 128>}, {transform_indices = @transform_3, window_bounds = array<i64: 1, 1, 1, 128>}]} {
    %c0 = arith.constant 0 : index
    %c0_0 = arith.constant 0 : index
    %c0_1 = arith.constant 0 : index
    %0 = vector.load %arg2[%c0, %c0_0, %c0_1] : memref<1x4x256xf32, #tpu.memory_space<vmem>>, vector<1x4x256xf32>
    %c0_2 = arith.constant 0 : index
    %c0_3 = arith.constant 0 : index
    %c0_4 = arith.constant 0 : index
    %1 = vector.load %arg3[%c0_2, %c0_3, %c0_4] : memref<1x1x256xi32, #tpu.memory_space<vmem>>, vector<1x1x256xi32>
    %c-100_i32 = arith.constant -100 : i32
    %2 = vector.broadcast %c-100_i32 : i32 to vector<1x1x256xi32>
    %3 = arith.cmpi eq, %1, %2 : vector<1x1x256xi32>
    %c0_i32 = arith.constant 0 : i32
    %4 = vector.broadcast %c0_i32 : i32 to vector<1x1x256xi32>
    %5 = arith.select %3, %4, %1 : vector<1x1x256xi1>, vector<1x1x256xi32>
    %cst = arith.constant dense<0xFF800000> : vector<1x256xf32>
    %6 = vector.multi_reduction <maximumf>, %0, %cst [1] : vector<1x4x256xf32> to vector<1x256xf32>
    %7 = vector.shape_cast %6 : vector<1x256xf32> to vector<1x1x256xf32>
    %8 = vector.broadcast %7 : vector<1x1x256xf32> to vector<1x4x256xf32>
    %9 = arith.subf %0, %8 : vector<1x4x256xf32>
    %10 = math.exp %9 : vector<1x4x256xf32>
    %cst_5 = arith.constant dense<0.000000e+00> : vector<1x256xf32>
    %11 = vector.multi_reduction <add>, %10, %cst_5 [1] : vector<1x4x256xf32> to vector<1x256xf32>
    %12 = vector.shape_cast %11 : vector<1x256xf32> to vector<1x1x256xf32>
    %13 = math.log %12 : vector<1x1x256xf32>
    %14 = arith.addf %7, %13 : vector<1x1x256xf32>
    %cst_6 = arith.constant dense<0.000000e+00> : vector<1x256xf32>
    %15 = vector.multi_reduction <add>, %0, %cst_6 [1] : vector<1x4x256xf32> to vector<1x256xf32>
    %16 = vector.shape_cast %15 : vector<1x256xf32> to vector<1x1x256xf32>
    %17 = tpu.iota {dimensions = array<i32: 1>} : vector<1x4x1xi32>
    %18 = vector.broadcast %17 : vector<1x4x1xi32> to vector<1x4x256xi32>
    %19 = vector.broadcast %5 : vector<1x1x256xi32> to vector<1x4x256xi32>
    %20 = arith.cmpi eq, %18, %19 : vector<1x4x256xi32>
    %cst_7 = arith.constant 0.000000e+00 : f32
    %21 = vector.broadcast %cst_7 : f32 to vector<1x4x256xf32>
    %22 = arith.select %20, %0, %21 : vector<1x4x256xi1>, vector<1x4x256xf32>
    %cst_8 = arith.constant dense<0.000000e+00> : vector<1x256xf32>
    %23 = vector.multi_reduction <add>, %22, %cst_8 [1] : vector<1x4x256xf32> to vector<1x256xf32>
    %24 = vector.shape_cast %23 : vector<1x256xf32> to vector<1x1x256xf32>
    %25 = arith.subf %24, %14 : vector<1x1x256xf32>
    %cst_9 = arith.constant 8.750000e-01 : f32
    %26 = vector.broadcast %cst_9 : f32 to vector<1x1x256xf32>
    %27 = arith.mulf %26, %25 : vector<1x1x256xf32>
    %cst_10 = arith.constant 4.000000e+00 : f32
    %28 = vector.broadcast %cst_10 : f32 to vector<1x1x256xf32>
    %29 = arith.mulf %28, %14 : vector<1x1x256xf32>
    %30 = arith.subf %16, %29 : vector<1x1x256xf32>
    %cst_11 = arith.constant 2.500000e-02 : f32
    %31 = vector.broadcast %cst_11 : f32 to vector<1x1x256xf32>
    %32 = arith.mulf %31, %30 : vector<1x1x256xf32>
    %33 = arith.addf %27, %32 : vector<1x1x256xf32>
    %cst_12 = arith.constant 0.000000e+00 : f32
    %34 = vector.broadcast %cst_12 : f32 to vector<1x1x256xf32>
    %35 = arith.subf %34, %33 : vector<1x1x256xf32>
    %cst_13 = arith.constant dense<true> : vector<1x1x256xi1>
    %36 = arith.xori %3, %cst_13 : vector<1x1x256xi1>
    %cst_14 = arith.constant 0.000000e+00 : f32
    %37 = vector.broadcast %cst_14 : f32 to vector<1x1x256xf32>
    %38 = arith.select %36, %35, %37 : vector<1x1x256xi1>, vector<1x1x256xf32>
    %cst_15 = arith.constant 1.000000e+00 : f32
    %39 = vector.broadcast %cst_15 : f32 to vector<1x128xf32>
    %40 = vector.shape_cast %38 : vector<1x1x256xf32> to vector<1x1x1x256xf32>
    %cst_16 = arith.constant dense<0.000000e+00> : vector<1xf32>
    %41 = vector.multi_reduction <add>, %40, %cst_16 [1, 2, 3] : vector<1x1x1x256xf32> to vector<1xf32>
    %42 = vector.shape_cast %41 : vector<1xf32> to vector<1x1x1x1xf32>
    %43 = vector.extract %42[0, 0, 0, 0] : f32 from vector<1x1x1x1xf32>
    %44 = vector.broadcast %43 : f32 to vector<1x128xf32>
    %45 = arith.mulf %44, %39 : vector<1x128xf32>
    %c0_17 = arith.constant 0 : index
    %c0_18 = arith.constant 0 : index
    %c0_19 = arith.constant 0 : index
    %c0_20 = arith.constant 0 : index
    %46 = vector.load %arg4[%c0_17, %c0_18, %c0_19, %c0_20] : memref<1x1x1x128xf32, #tpu.memory_space<vmem>>, vector<1x1x1x128xf32>
    %47 = vector.shape_cast %46 : vector<1x1x1x128xf32> to vector<1x128xf32>
    %48 = vector.shape_cast %45 : vector<1x128xf32> to vector<1x1x1x128xf32>
    tpu.vector_store %arg4[%c0_17, %c0_18, %c0_19, %c0_20], %48 {strides = array<i32>} : memref<1x1x1x128xf32, #tpu.memory_space<vmem>>, vector<1x1x1x128xf32>,
    %49 = arith.extui %36 : vector<1x1x256xi1> to vector<1x1x256xi32>
    %50 = arith.sitofp %49 : vector<1x1x256xi32> to vector<1x1x256xf32>
    %51 = vector.shape_cast %50 : vector<1x1x256xf32> to vector<1x1x1x256xf32>
    %cst_21 = arith.constant dense<0.000000e+00> : vector<1xf32>
    %52 = vector.multi_reduction <add>, %51, %cst_21 [1, 2, 3] : vector<1x1x1x256xf32> to vector<1xf32>
    %53 = vector.shape_cast %52 : vector<1xf32> to vector<1x1x1x1xf32>
    %54 = vector.extract %53[0, 0, 0, 0] : f32 from vector<1x1x1x1xf32>
    %55 = vector.broadcast %54 : f32 to vector<1x128xf32>
    %56 = arith.mulf %55, %39 : vector<1x128xf32>
    %c0_22 = arith.constant 0 : index
    %c0_23 = arith.constant 0 : index
    %c0_24 = arith.constant 0 : index
    %c0_25 = arith.constant 0 : index
    %57 = vector.load %arg5[%c0_22, %c0_23, %c0_24, %c0_25] : memref<1x1x1x128xf32, #tpu.memory_space<vmem>>, vector<1x1x1x128xf32>
    %58 = vector.shape_cast %57 : vector<1x1x1x128xf32> to vector<1x128xf32>
    %59 = vector.shape_cast %56 : vector<1x128xf32> to vector<1x1x1x128xf32>
    tpu.vector_store %arg5[%c0_22, %c0_23, %c0_24, %c0_25], %59 {strides = array<i32>} : memref<1x1x1x128xf32, #tpu.memory_space<vmem>>, vector<1x1x1x128xf32>,
    return
  }
  func.func @transform_0(%arg0: i32, %arg1: i32) -> (i32, i32, i32) {
    %c0_i32 = arith.constant 0 : i32
    %c0_i32_0 = arith.constant 0 : i32
    return %arg0, %c0_i32, %arg1 : i32, i32, i32
  }
  func.func @transform_1(%arg0: i32, %arg1: i32) -> (i32, i32, i32) {
    %c0_i32 = arith.constant 0 : i32
    %c0_i32_0 = arith.constant 0 : i32
    return %arg0, %c0_i32, %arg1 : i32, i32, i32
  }
  func.func @transform_2(%arg0: i32, %arg1: i32) -> (i32, i32, i32, i32) {
    %c0_i32 = arith.constant 0 : i32
    %c0_i32_0 = arith.constant 0 : i32
    %c0_i32_1 = arith.constant 0 : i32
    return %arg0, %arg1, %c0_i32, %c0_i32_0 : i32, i32, i32, i32
  }
  func.func @transform_3(%arg0: i32, %arg1: i32) -> (i32, i32, i32, i32) {
    %c0_i32 = arith.constant 0 : i32
    %c0_i32_0 = arith.constant 0 : i32
    %c0_i32_1 = arith.constant 0 : i32
    return %arg0, %arg1, %c0_i32, %c0_i32_0 : i32, i32, i32, i32
  }
}

</mosaic_0001>

<llo_original>
// kernel: tpu_custom_call.1
$region0: #{tpu_custom_call.1}
  #allocation0 [shape = 'u32[]', space=smem, size = 0x4, offset = 0x4, fixed_abs, tag = 'smem constant byte address 0x4 - core index']
  #allocation1 [shape = 'u32[144,128]{1,0:T(1,128)}', space=vmem, size = 0x12000, scoped, tag = 'internal scratch']
  %s0 = inlined_call_operand.hbm [shape: f32[2,4,256], index: 0, kind: input, shape index: {}]
  %s1 = inlined_call_operand.hbm [shape: s32[2,1,256], index: 1, kind: input, shape index: {}]
  %s2 = inlined_call_operand.hbm [shape: f32[2,1,1,128], index: 2, kind: output, shape index: {0}]
  %s3 = inlined_call_operand.hbm [shape: f32[2,1,1,128], index: 3, kind: output, shape index: {1}]
  %4 = xla_tuple %s2, %s3
  %s5 = sld [smem:[#allocation0]]
  $region57: #{tpu_custom_call.1} parent=0
    _
  %s7 = ssub.s32 1, %s5
  %s8 = scalar_select 0, %s7, %s5
  $region1: #{tpu_custom_call.1} parent=0
    #allocation2 [shape = 'u8[8192]{0}', space=vmem, size = 0x2000, scoped, tag = 'input window, operand 0']
    #allocation3 [shape = 's32[2]{0}', space=sflag, size = 0x8, scoped, tag = 'scoped memory for tpu_custom_call.1']
    #allocation4 [shape = 's32[2]{0}', space=sflag, size = 0x8, scoped, tag = 'scoped memory for tpu_custom_call.1']
    #allocation5 [shape = 'u8[2048]{0}', space=vmem, size = 0x800, scoped, tag = 'input window, operand 1']
    #allocation6 [shape = 's32[2]{0}', space=sflag, size = 0x8, scoped, tag = 'scoped memory for tpu_custom_call.1']
    #allocation7 [shape = 'u8[1024]{0}', space=vmem, size = 0x400, scoped, tag = 'output window, operand 0']
    #allocation8 [shape = 'u8[1024]{0}', space=vmem, size = 0x400, scoped, tag = 'output window, operand 1']
    #allocation9 [shape = 's32[2]{0}', space=sflag, size = 0x8, scoped, tag = 'scoped memory for tpu_custom_call.1']
    %9 = vsyncpa [#allocation3], 0
    %s10 = scalar_lea.sflag [#allocation3], 1
    %11 = vsyncpa %s10, 0
    %12 = vsyncpa [#allocation6], 0
    %s13 = scalar_lea.sflag [#allocation6], 1
    %14 = vsyncpa %s13, 0
    %15 = vsyncpa [#allocation4], 0
    %s16 = scalar_lea.sflag [#allocation4], 1
    %17 = vsyncpa %s16, 0
    %18 = vsyncpa [#allocation9], 0
    %s19 = scalar_lea.sflag [#allocation9], 1
    %20 = vsyncpa %s19, 0
    loop: start=0, step=1, limit=4
    $region2: #{tpu_custom_call.1} parent=1 // loop_pre_header
      _
    $region3: #{tpu_custom_call.1} parent=1 // loop_header
      %s22 = sphi 0, %s26
      %p23 = scmp.ge.s32.totalorder %s22, 4
      %s29 = sphi 0, %s41
      %s30 = sphi 0, %s37
      %s31 = sphi 0, %s29
      %s32 = sphi 0, %s30
      %s33 = sphi 0, %s31
      %s34 = sphi 0, %s32
      %s46 = sphi 0, %s48
      %s49 = sphi 0, %s46
      %s50 = sphi 0, %s49
      %s66 = sphi 0, %s50
      %s74 = sphi 0, %s76
      %s77 = sphi 0, %s74
      %s78 = sphi 0, %s77
      %s94 = sphi 0, %s78
      %s102 = sphi 0, %s104
      %s105 = sphi 0, %s102
      %s106 = sphi 0, %s105
      %s122 = sphi 0, %s106
      %s130 = sphi 0, %s132
      %s133 = sphi 0, %s130
      %s134 = sphi 0, %s133
      %s150 = sphi 0, %s134
    $region4: #{tpu_custom_call.1} parent=1 // loop_header_branch
      %25 = sbr.rel (%p23) target = $region8
    $region5: #{tpu_custom_call.1} parent=1 // loop_body
      %s27 = ssub.s32 %s22, 1
      %s28 = ssub.s32 %s22, 2
      %s35 = sadd.s32 1, %s30
      %p36 = scmp.ge.s32.totalorder %s35, 1
      %s37 = scalar_select %p36, 0, %s35
      %s38 = sadd.s32 1, %s29
      %s39 = scalar_select %p36, %s38, %s29
      %p40 = scmp.ge.s32.totalorder %s39, 2
      %s41 = scalar_select %p40, 0, %s39
      %s42 = ssub.s32 %s29, %s41
      %s43 = ssub.s32 %s30, %s37
      %s44 = sor.u32 %s42, %s43
      %p45 = scmp.eq.s32.totalorder %s44, 0
      %s47 = sadd.s32 %s46, 1
      %s48 = scalar_select %p45, %s46, %s47
      %p51 = pneg %p45
      %p52 = scmp.eq.s32.totalorder %s22, 1
      %p53 = por %p51, %p52
      %p54 = scmp.ne.s32.totalorder %s46, %s49
      %p55 = scmp.eq.s32.totalorder %s22, 0
      %p56 = por %p54, %p55
      %p57 = scmp.ne.s32.totalorder %s46, %s49
      %p58 = scmp.eq.s32.totalorder %s27, 1
      %p59 = por %p57, %p58
      %p60 = scmp.ne.s32.totalorder %s49, %s50
      %p61 = scmp.eq.s32.totalorder %s27, 0
      %p62 = por %p60, %p61
      %p63 = scmp.ne.s32.totalorder %s49, %s50
      %p64 = scmp.eq.s32.totalorder %s28, 1
      %p65 = por %p63, %p64
      %p67 = scmp.ne.s32.totalorder %s50, %s66
      %p68 = scmp.eq.s32.totalorder %s28, 0
      %p69 = por %p67, %p68
      %s70 = ssub.s32 %s29, %s41
      %s71 = ssub.s32 %s30, %s37
      %s72 = sor.u32 %s70, %s71
      %p73 = scmp.eq.s32.totalorder %s72, 0
      %s75 = sadd.s32 %s74, 1
      %s76 = scalar_select %p73, %s74, %s75
      %p79 = pneg %p73
      %p80 = scmp.eq.s32.totalorder %s22, 1
      %p81 = por %p79, %p80
      %p82 = scmp.ne.s32.totalorder %s74, %s77
      %p83 = scmp.eq.s32.totalorder %s22, 0
      %p84 = por %p82, %p83
      %p85 = scmp.ne.s32.totalorder %s74, %s77
      %p86 = scmp.eq.s32.totalorder %s27, 1
      %p87 = por %p85, %p86
      %p88 = scmp.ne.s32.totalorder %s77, %s78
      %p89 = scmp.eq.s32.totalorder %s27, 0
      %p90 = por %p88, %p89
      %p91 = scmp.ne.s32.totalorder %s77, %s78
      %p92 = scmp.eq.s32.totalorder %s28, 1
      %p93 = por %p91, %p92
      %p95 = scmp.ne.s32.totalorder %s78, %s94
      %p96 = scmp.eq.s32.totalorder %s28, 0
      %p97 = por %p95, %p96
      %s98 = ssub.s32 %s29, %s41
      %s99 = ssub.s32 %s30, %s37
      %s100 = sor.u32 %s98, %s99
      %p101 = scmp.eq.s32.totalorder %s100, 0
      %s103 = sadd.s32 %s102, 1
      %s104 = scalar_select %p101, %s102, %s103
      %p107 = pneg %p101
      %p108 = scmp.eq.s32.totalorder %s22, 1
      %p109 = por %p107, %p108
      %p110 = scmp.ne.s32.totalorder %s102, %s105
      %p111 = scmp.eq.s32.totalorder %s22, 0
      %p112 = por %p110, %p111
      %p113 = scmp.ne.s32.totalorder %s102, %s105
      %p114 = scmp.eq.s32.totalorder %s27, 1
      %p115 = por %p113, %p114
      %p116 = scmp.ne.s32.totalorder %s105, %s106
      %p117 = scmp.eq.s32.totalorder %s27, 0
      %p118 = por %p116, %p117
      %p119 = scmp.ne.s32.totalorder %s105, %s106
      %p120 = scmp.eq.s32.totalorder %s28, 1
      %p121 = por %p119, %p120
      %p123 = scmp.ne.s32.totalorder %s106, %s122
      %p124 = scmp.eq.s32.totalorder %s28, 0
      %p125 = por %p123, %p124
      %s126 = ssub.s32 %s29, %s41
      %s127 = ssub.s32 %s30, %s37
      %s128 = sor.u32 %s126, %s127
      %p129 = scmp.eq.s32.totalorder %s128, 0
      %s131 = sadd.s32 %s130, 1
      %s132 = scalar_select %p129, %s130, %s131
      %p135 = pneg %p129
      %p136 = scmp.eq.s32.totalorder %s22, 1
      %p137 = por %p135, %p136
      %p138 = scmp.ne.s32.totalorder %s130, %s133
      %p139 = scmp.eq.s32.totalorder %s22, 0
      %p140 = por %p138, %p139
      %p141 = scmp.ne.s32.totalorder %s130, %s133
      %p142 = scmp.eq.s32.totalorder %s27, 1
      %p143 = por %p141, %p142
      %p144 = scmp.ne.s32.totalorder %s133, %s134
      %p145 = scmp.eq.s32.totalorder %s27, 0
      %p146 = por %p144, %p145
      %p147 = scmp.ne.s32.totalorder %s133, %s134
      %p148 = scmp.eq.s32.totalorder %s28, 1
      %p149 = por %p147, %p148
      %p151 = scmp.ne.s32.totalorder %s134, %s150
      %p152 = scmp.eq.s32.totalorder %s28, 0
      %p153 = por %p151, %p152
      %p154 = scmp.le.s32.totalorder 1, %s22
      %p155 = scmp.lt.s32.totalorder %s22, 3
      %p156 = pnand %p154, %p155
      %p157 = pneg %p156
      // Predicated region
      $region9: #{tpu_custom_call.1} parent=5 // pred_check
        _
      $region10: #{tpu_custom_call.1} parent=5 // pred_check_branch
        %159 = sbr.rel (%p156) target = $region12
      $region11: #{tpu_custom_call.1} parent=5 // pred_region
        %s160 = ssub.s32 %s22, 1
      $region12: #{tpu_custom_call.1} parent=5 // pred_fallthru
        _
      %p161 = scmp.lt.s32.totalorder %s22, 2
      // Predicated region
      $region13: #{tpu_custom_call.1} parent=5 // pred_check
        %p162 = pneg %p161
      $region14: #{tpu_custom_call.1} parent=5 // pred_check_branch
        %164 = sbr.rel (%p162) target = $region16
      $region15: #{tpu_custom_call.1} parent=5 // pred_region
        // Predicated region
        $region17: #{tpu_custom_call.1} parent=15 // pred_check
          %p165 = pneg %p56
        $region18: #{tpu_custom_call.1} parent=15 // pred_check_branch
          %167 = sbr.rel (%p165) target = $region20
        $region19: #{tpu_custom_call.1} parent=15 // pred_region
          %s168 = sand.u32 %s46, 1
          %s169 = scalar_lea.sflag [#allocation3], %s168
          %s170 = sand.u32 %s46, 1
          %s171 = smul.addr %s170, 8
          %s172 = scalar_lea.vmem [#allocation2], %s171
          %s173 = smul.u32 2, %s30
          %s175 = ssub.s32 128, 128
          %176 = vsyncadd %s169, %s175
          %s177 = smul.addr %s29, 2
          %s178 = sadd.s32 %s173, %s177
          %s179 = smul.addr %s178, 64
          %s180 = scalar_lea.hbm %s0, %s179
          %s182 = sshll.u32 %s172, 4
          %s183 = int_to_ptr.vmem [resolvable:$true] %s182
          %185 = dma.hbm_to_vmem [thread:$0]  %s180, 128, %s183, %s169
        $region20: #{tpu_custom_call.1} parent=15 // pred_fallthru
          _
        // Predicated region
        $region21: #{tpu_custom_call.1} parent=15 // pred_check
          %p186 = pneg %p84
        $region22: #{tpu_custom_call.1} parent=15 // pred_check_branch
          %188 = sbr.rel (%p186) target = $region24
        $region23: #{tpu_custom_call.1} parent=15 // pred_region
          %s189 = sand.u32 %s74, 1
          %s190 = scalar_lea.sflag [#allocation6], %s189
          %s191 = sand.u32 %s74, 1
          %s192 = smul.addr %s191, 2
          %s193 = scalar_lea.vmem [#allocation5], %s192
          %s194 = smul.u32 2, %s30
          %s196 = ssub.s32 32, 32
          %197 = vsyncadd %s190, %s196
          %s198 = smul.addr %s29, 2
          %s199 = sadd.s32 %s194, %s198
          %s200 = smul.addr %s199, 16
          %s201 = scalar_lea.hbm %s1, %s200
          %s203 = sshll.u32 %s193, 4
          %s204 = int_to_ptr.vmem [resolvable:$true] %s203
          %206 = dma.hbm_to_vmem [thread:$0]  %s201, 32, %s204, %s190
        $region24: #{tpu_custom_call.1} parent=15 // pred_fallthru
          _
      $region16: #{tpu_custom_call.1} parent=5 // pred_fallthru
        _
      %p207 = scmp.le.s32.totalorder 1, %s22
      %p208 = scmp.lt.s32.totalorder %s22, 3
      %p209 = pnand %p207, %p208
      %p210 = pneg %p209
      // Predicated region
      $region25: #{tpu_custom_call.1} parent=5 // pred_check
        _
      $region26: #{tpu_custom_call.1} parent=5 // pred_check_branch
        %212 = sbr.rel (%p209) target = $region28
      $region27: #{tpu_custom_call.1} parent=5 // pred_region
        %s213 = ssub.s32 %s22, 1
        %s214 = sand.u32 %s49, 1
        %s215 = scalar_lea.sflag [#allocation3], %s214
        %s216 = sand.u32 %s49, 1
        %s217 = smul.addr %s216, 8
        %s218 = scalar_lea.vmem [#allocation2], %s217
        // Predicated region
        $region29: #{tpu_custom_call.1} parent=27 // pred_check
          %p219 = pneg %p62
        $region30: #{tpu_custom_call.1} parent=27 // pred_check_branch
          %221 = sbr.rel (%p219) target = $region32
        $region31: #{tpu_custom_call.1} parent=27 // pred_region
          %222 = dma.done %s215, 128
        $region32: #{tpu_custom_call.1} parent=27 // pred_fallthru
          _
        %s223 = sand.u32 %s77, 1
        %s224 = scalar_lea.sflag [#allocation6], %s223
        %s225 = sand.u32 %s77, 1
        %s226 = smul.addr %s225, 2
        %s227 = scalar_lea.vmem [#allocation5], %s226
        // Predicated region
        $region33: #{tpu_custom_call.1} parent=27 // pred_check
          %p228 = pneg %p90
        $region34: #{tpu_custom_call.1} parent=27 // pred_check_branch
          %230 = sbr.rel (%p228) target = $region36
        $region35: #{tpu_custom_call.1} parent=27 // pred_region
          %231 = dma.done %s224, 32
        $region36: #{tpu_custom_call.1} parent=27 // pred_fallthru
          _
        %s232 = sand.u32 %s49, 1
        %s233 = scalar_lea.sflag [#allocation3], %s232
        %s234 = sand.u32 %s49, 1
        %s235 = smul.addr %s234, 8
        %s236 = scalar_lea.vmem [#allocation2], %s235
        %p237 = pneg %p62
        %p238 = pneg %p59
        %s239 = sand.u32 %s77, 1
        %s240 = scalar_lea.sflag [#allocation6], %s239
        %s241 = sand.u32 %s77, 1
        %s242 = smul.addr %s241, 2
        %s243 = scalar_lea.vmem [#allocation5], %s242
        %p244 = pneg %p90
        %p245 = pneg %p87
        %p246 = pneg %p118
        %p247 = pneg %p115
        %s248 = sand.u32 %s105, 1
        %s249 = scalar_lea.sflag [#allocation4], %s248
        %s250 = sand.u32 %s105, 1
        %s251 = scalar_lea.vmem [#allocation7], %s250
        %p252 = pneg %p146
        %p253 = pneg %p143
        %s254 = sand.u32 %s133, 1
        %s255 = scalar_lea.sflag [#allocation9], %s254
        %s256 = sand.u32 %s133, 1
        %s257 = scalar_lea.vmem [#allocation8], %s256
        %s258 = smul.u32 2, %s32
        %s259 = smul.u32 2, %s32
        %v260 = vld [vmem:[%s218] sm:$0xff]
        %v261 = vld [vmem:[%s227] sm:$0x3]
        %vm262 = vcmp.eq.s32.totalorder %v261, 4294967196
        %v263 = vsel %vm262, 0, %v261
        %v265 = vcombine.high %v260, %v260
        %vm267 = vcmask 1043456
        %v268 = vsel %vm267, %v260, -inf
        %v269 = vrot.slane %v268, 4
        %v270 = vmax.f32 %v268, %v269
        %v271 = vrot.slane %v270, 2
        %v272 = vmax.f32 %v270, %v271
        %v273 = vrot.slane %v272, 1
        %v274 = vmax.f32 %v272, %v273
        %v275 = vsel %vm267, %v265, -inf
        %v276 = vrot.slane %v275, 4
        %v277 = vmax.f32 %v275, %v276
        %v278 = vrot.slane %v277, 2
        %v279 = vmax.f32 %v277, %v278
        %v280 = vrot.slane %v279, 1
        %v281 = vmax.f32 %v279, %v280
        %v284 = vcombine.low %v274, %v281
        %v286 = vsub.f32 %v260, %v284
        %v287 = vmul.f32 %v286, 1.442695
        %v288 = vpow.pop %v287
        %v290 = vcombine.high %v288, %v288
        %v292 = vsel %vm267, %v288, 0.0
        %v293 = vrot.slane %v292, 4
        %v294 = vadd.f32 %v292, %v293
        %v295 = vrot.slane %v294, 2
        %v296 = vadd.f32 %v294, %v295
        %v297 = vrot.slane %v296, 1
        %v298 = vadd.f32 %v296, %v297
        %v299 = vsel %vm267, %v290, 0.0
        %v300 = vrot.slane %v299, 4
        %v301 = vadd.f32 %v299, %v300
        %v302 = vrot.slane %v301, 2
        %v303 = vadd.f32 %v301, %v302
        %v304 = vrot.slane %v303, 1
        %v305 = vadd.f32 %v303, %v304
        %v306 = vlog2.pop %v298
        %v307 = vmul.f32 %v306, 0.6931472
        %v308 = vlog2.pop %v305
        %v309 = vmul.f32 %v308, 0.6931472
        %v310 = vadd.f32 %v274, %v307
        %v311 = vadd.f32 %v281, %v309
        %v312 = vsel %vm267, %v260, 0.0
        %v313 = vrot.slane %v312, 4
        %v314 = vadd.f32 %v312, %v313
        %v315 = vrot.slane %v314, 2
        %v316 = vadd.f32 %v314, %v315
        %v317 = vrot.slane %v316, 1
        %v318 = vadd.f32 %v316, %v317
        %v319 = vsel %vm267, %v265, 0.0
        %v320 = vrot.slane %v319, 4
        %v321 = vadd.f32 %v319, %v320
        %v322 = vrot.slane %v321, 2
        %v323 = vadd.f32 %v321, %v322
        %v324 = vrot.slane %v323, 1
        %v325 = vadd.f32 %v323, %v324
        %v326 = vlaneseq
        %v327 = vshrl.u32 %v326, 7
        %v328 = vlaneseq
        %v329 = vshrl.u32 %v328, 7
        %v330 = vsub.s32 0, %v329
        %v331 = vrot.slane %v263, %v330
        %v332 = vlaneseq
        %v333 = vshrl.u32 %v332, 7
        %v334 = vsub.s32 1, %v333
        %v335 = vrot.slane %v263, %v334
        %vm336 = vcmp.eq.s32.totalorder %v327, %v331
        %vm337 = vcmp.eq.s32.totalorder %v327, %v335
        %v338 = vsel %vm336, %v260, 0.0
        %v339 = vsel %vm337, %v265, 0.0
        %v340 = vsel %vm267, %v338, 0.0
        %v341 = vrot.slane %v340, 4
        %v342 = vadd.f32 %v340, %v341
        %v343 = vrot.slane %v342, 2
        %v344 = vadd.f32 %v342, %v343
        %v345 = vrot.slane %v344, 1
        %v346 = vadd.f32 %v344, %v345
        %v347 = vsel %vm267, %v339, 0.0
        %v348 = vrot.slane %v347, 4
        %v349 = vadd.f32 %v347, %v348
        %v350 = vrot.slane %v349, 2
        %v351 = vadd.f32 %v349, %v350
        %v352 = vrot.slane %v351, 1
        %v353 = vadd.f32 %v351, %v352
        %v354 = vsub.f32 %v346, %v310
        %v355 = vsub.f32 %v353, %v311
        %v356 = vmul.f32 %v354, 0.875
        %v357 = vmul.f32 %v355, 0.875
        %v358 = vmul.f32 %v310, 4.0
        %v359 = vmul.f32 %v311, 4.0
        %v360 = vsub.f32 %v318, %v358
        %v361 = vsub.f32 %v325, %v359
        %v362 = vmul.f32 %v360, 0.025
        %v363 = vmul.f32 %v361, 0.025
        %v364 = vadd.f32 %v356, %v362
        %v365 = vadd.f32 %v357, %v363
        %v366 = vsub.f32 0.0, %v364
        %v367 = vsub.f32 0.0, %v365
        %vm368 = vmxor %vm262, 1
        %v371 = vcombine.low %v366, %v367
        %v373 = vunpack.c.l.s4 1966171168
        %v374 = vunpack.c.0.s8 %v373
        %v375 = vlaneseq
        %v376 = vshrl.u32 %v375, 7
        %v377 = vsub.s32 %v374, %v376
        %v378 = vrot.slane %v371, %v377
        %v380 = vunpack.c.l.s4 1966171168
        %v381 = vunpack.c.0.s8 %v380
        %v382 = vlaneseq
        %v383 = vshrl.u32 %v382, 7
        %v384 = vsub.s32 %v381, %v383
        %v385 = vrot.slane %v378, %v384
        %v387 = vsel %vm368, %v385, 0.0
        %v389 = vlaneseq
        %v390 = vshrl.u32 %v389, 7
        %v391 = vsub.s32 0, %v390
        %v392 = vrot.slane %v387, %v391
        %v393 = vlaneseq
        %v394 = vshrl.u32 %v393, 7
        %v395 = vsub.s32 1, %v394
        %v396 = vrot.slane %v387, %v395
        %vm399 = vcmask 1040384
        %v400 = vsel %vm399, %v392, 0.0
        %v401 = vsel %vm399, %v396, 0.0
        %v402 = vadd.f32 %v400, %v401
        %403 = vadd.xlane.f32.xlu0 %v402
        %v404 = vpop.xlane.xlu0 %403
        %v405 = vrot.slane %v404, 4
        %v406 = vadd.f32 %v404, %v405
        %v407 = vrot.slane %v406, 2
        %v408 = vadd.f32 %v406, %v407
        %v409 = vrot.slane %v408, 1
        %v410 = vadd.f32 %v408, %v409
        %s411 = vtos %v410
        %v412 = vstv %s411
        %413 = vst [vmem:[%s251] sm:$0x1] %v412
        %v414 = vsel %vm368, 1, 0
        %v415 = vcvt.s32.f32 %v414
        %v417 = vlaneseq
        %v418 = vshrl.u32 %v417, 7
        %v419 = vsub.s32 0, %v418
        %v420 = vrot.slane %v415, %v419
        %v421 = vlaneseq
        %v422 = vshrl.u32 %v421, 7
        %v423 = vsub.s32 1, %v422
        %v424 = vrot.slane %v415, %v423
        %v427 = vsel %vm399, %v420, 0.0
        %v428 = vsel %vm399, %v424, 0.0
        %v429 = vadd.f32 %v427, %v428
        %430 = vadd.xlane.f32.xlu0 %v429
        %v431 = vpop.xlane.xlu0 %430
        %v432 = vrot.slane %v431, 4
        %v433 = vadd.f32 %v431, %v432
        %v434 = vrot.slane %v433, 2
        %v435 = vadd.f32 %v433, %v434
        %v436 = vrot.slane %v435, 1
        %v437 = vadd.f32 %v435, %v436
        %s438 = vtos %v437
        %v439 = vstv %s438
        %440 = vst [vmem:[%s257] sm:$0x1] %v439
        %s441 = sand.u32 %s105, 1
        %s442 = scalar_lea.sflag [#allocation4], %s441
        %s443 = sand.u32 %s105, 1
        %s444 = scalar_lea.vmem [#allocation7], %s443
        %s445 = sand.u32 %s133, 1
        %s446 = scalar_lea.sflag [#allocation9], %s445
        %s447 = sand.u32 %s133, 1
        %s448 = scalar_lea.vmem [#allocation8], %s447
        // Predicated region
        $region37: #{tpu_custom_call.1} parent=27 // pred_check
          %p449 = pneg %p115
        $region38: #{tpu_custom_call.1} parent=27 // pred_check_branch
          %451 = sbr.rel (%p449) target = $region40
        $region39: #{tpu_custom_call.1} parent=27 // pred_region
          %s453 = ssub.s32 16, 16
          %454 = vsyncadd %s442, %s453
          %s455 = sadd.s32 %s32, %s31
          %s456 = smul.addr %s455, 16
          %s457 = scalar_lea.hbm %s2, %s456
          %s459 = sshll.u32 %s444, 4
          %s460 = int_to_ptr.vmem [resolvable:$true] %s459
          %462 = dma.vmem_to_hbm [thread:$0]  %s460, 16, %s457, %s442
        $region40: #{tpu_custom_call.1} parent=27 // pred_fallthru
          _
        // Predicated region
        $region41: #{tpu_custom_call.1} parent=27 // pred_check
          %p463 = pneg %p143
        $region42: #{tpu_custom_call.1} parent=27 // pred_check_branch
          %465 = sbr.rel (%p463) target = $region44
        $region43: #{tpu_custom_call.1} parent=27 // pred_region
          %s467 = ssub.s32 16, 16
          %468 = vsyncadd %s446, %s467
          %s469 = sadd.s32 %s32, %s31
          %s470 = smul.addr %s469, 16
          %s471 = scalar_lea.hbm %s3, %s470
          %s473 = sshll.u32 %s448, 4
          %s474 = int_to_ptr.vmem [resolvable:$true] %s473
          %476 = dma.vmem_to_hbm [thread:$0]  %s474, 16, %s471, %s446
        $region44: #{tpu_custom_call.1} parent=27 // pred_fallthru
          _
      $region28: #{tpu_custom_call.1} parent=5 // pred_fallthru
        _
      %p477 = scmp.le.s32.totalorder 2, %s22
      // Predicated region
      $region45: #{tpu_custom_call.1} parent=5 // pred_check
        %p478 = pneg %p477
      $region46: #{tpu_custom_call.1} parent=5 // pred_check_branch
        %480 = sbr.rel (%p478) target = $region48
      $region47: #{tpu_custom_call.1} parent=5 // pred_region
        %s481 = ssub.s32 %s22, 2
        // Predicated region
        $region49: #{tpu_custom_call.1} parent=47 // pred_check
          %p482 = pneg %p121
        $region50: #{tpu_custom_call.1} parent=47 // pred_check_branch
          %484 = sbr.rel (%p482) target = $region52
        $region51: #{tpu_custom_call.1} parent=47 // pred_region
          %s485 = sand.u32 %s106, 1
          %s486 = scalar_lea.sflag [#allocation4], %s485
          %s487 = sand.u32 %s106, 1
          %s488 = scalar_lea.vmem [#allocation7], %s487
          %489 = dma.done %s486, 16
        $region52: #{tpu_custom_call.1} parent=47 // pred_fallthru
          _
        // Predicated region
        $region53: #{tpu_custom_call.1} parent=47 // pred_check
          %p490 = pneg %p149
        $region54: #{tpu_custom_call.1} parent=47 // pred_check_branch
          %492 = sbr.rel (%p490) target = $region56
        $region55: #{tpu_custom_call.1} parent=47 // pred_region
          %s493 = sand.u32 %s134, 1
          %s494 = scalar_lea.sflag [#allocation9], %s493
          %s495 = sand.u32 %s134, 1
          %s496 = scalar_lea.vmem [#allocation8], %s495
          %497 = dma.done %s494, 16
        $region56: #{tpu_custom_call.1} parent=47 // pred_fallthru
          _
      $region48: #{tpu_custom_call.1} parent=5 // pred_fallthru
        _
    $region6: #{tpu_custom_call.1} parent=1 // loop_footer
      %s26 = sadd.s32 1, %s22
    $region7: #{tpu_custom_call.1} parent=1 // loop_footer_branch
      %21 = sbr.rel target = $region3
    $region8: #{tpu_custom_call.1} parent=1 // loop_exit
      _
    %498 = vsyncpa [#allocation3], 1
    %s499 = scalar_lea.sflag [#allocation3], 1
    %500 = vsyncpa %s499, 1
    %501 = vsyncpa [#allocation6], 1
    %s502 = scalar_lea.sflag [#allocation6], 1
    %503 = vsyncpa %s502, 1
    %504 = vsyncpa [#allocation4], 1
    %s505 = scalar_lea.sflag [#allocation4], 1
    %506 = vsyncpa %s505, 1
    %507 = vsyncpa [#allocation9], 1
    %s508 = scalar_lea.sflag [#allocation9], 1
    %509 = vsyncpa %s508, 1

</llo_original>
